<compile_context>
chip_gen: v5e
topology: v5e:2x2
jax: 0.10.0
libtpu: 0.0.40
codegen_flags: <defaults>
</compile_context>

<pallas_src>
import functools

import jax
import jax.numpy as jnp
from jax.experimental import pallas as pl
from jax.experimental.pallas import tpu as pltpu

LN_EPS = 1e-5  # torch.nn.LayerNorm default


# ---------------------------------------------------------------------------
# LayerNorm helpers
# ---------------------------------------------------------------------------
def _layer_norm_fast(x, gamma, beta, eps=LN_EPS):
    """Two-moment LayerNorm: both reductions are independent (shorter XLU chain)."""
    n = x.shape[-1]
    s1 = jnp.sum(x, axis=-1, keepdims=True)
    s2 = jnp.sum(x * x, axis=-1, keepdims=True)
    mean = s1 * (1.0 / n)
    var = jnp.maximum(s2 * (1.0 / n) - mean * mean, 0.0)
    return (x - mean) * jax.lax.rsqrt(var + eps) * gamma + beta


def _layer_norm_ref(x, gamma, beta, eps=LN_EPS):
    """Standard-form LayerNorm for the pure-JAX reference / host precompute."""
    mean = jnp.mean(x, axis=-1, keepdims=True)
    var = jnp.mean((x - mean) ** 2, axis=-1, keepdims=True)
    return (x - mean) * jax.lax.rsqrt(var + eps) * gamma + beta


# ---------------------------------------------------------------------------
# Single-step kernel (matches the PyTorch LSTMCell.forward)
# Packed gate order along the 4H axis is [i | f | o | g].
# ---------------------------------------------------------------------------
def lstm_cell_kernel(x_ref, h_ref, c_ref, w_ih_ref, w_hh_ref,
                     gate_p_ref, hid_p_ref, h_out_ref, c_out_ref):
    H = c_ref.shape[-1]

    x = x_ref[...]
    h_prev = h_ref[...]
    c_prev = c_ref[...]

    gp = gate_p_ref[...]   # (3, 4H): [b_ih | lnx_gamma | lnx_beta + b_hh]
    hp = hid_p_ref[...]    # (4, H):  [lnc_gamma | lnc_beta | lnh_gamma | lnh_beta]

    wd = w_ih_ref.dtype    # bf16 weights fine on all generations; f32 for exact check
    gx = jnp.dot(x.astype(wd), w_ih_ref[...],
                 preferred_element_type=jnp.float32) + gp[0:1]
    # LayerNorm over the 4H gate axis (x-path only); beta already includes b_hh.
    gx = _layer_norm_fast(gx, gp[1:2], gp[2:3])
    gh = jnp.dot(h_prev.astype(wd), w_hh_ref[...],
                 preferred_element_type=jnp.float32)
    gates = gx + gh

    # Packed order [i|f|o|g]: one sigmoid on the contiguous 3H slice.
    sig = jax.nn.sigmoid(gates[:, :3 * H])
    i_t = sig[:, :H]
    f_t = sig[:, H:2 * H]
    o_t = sig[:, 2 * H:3 * H]
    g_t = jnp.tanh(gates[:, 3 * H:])

    c_t = _layer_norm_fast(f_t * c_prev + i_t * g_t, hp[0:1], hp[1:2])
    h_t = _layer_norm_fast(o_t * jnp.tanh(c_t), hp[2:3], hp[3:4])
    # TODO(synk): dropout=0.0 in this config, so nn.Dropout is a no-op and is omitted.

    h_out_ref[...] = h_t.astype(h_out_ref.dtype)
    c_out_ref[...] = c_t.astype(c_out_ref.dtype)


def lstm_cell_pallas(x, h_prev, c_prev, packed):
    B, I = x.shape
    H = h_prev.shape[1]
    assert H % 128 == 0 and B % 8 == 0, "H must be multiple of 128, B multiple of 8"

    inputs = (x, h_prev, c_prev,
              packed["w_ih_t"], packed["w_hh_t"],
              packed["gate_params"], packed["hid_params"])
    vmem = pl.BlockSpec(memory_space=pltpu.MemorySpace.VMEM)

    bytes_accessed = sum(int(a.size) * a.dtype.itemsize for a in inputs)
    bytes_accessed += 2 * B * H * 4  # outputs
    cost = pl.CostEstimate(
        flops=2 * B * (I + H) * 4 * H + 40 * B * H,
        transcendentals=5 * B * H,
        bytes_accessed=bytes_accessed,
    )

    h_t, c_t = pl.pallas_call(
        lstm_cell_kernel,
        out_shape=(jax.ShapeDtypeStruct((B, H), jnp.float32),
                   jax.ShapeDtypeStruct((B, H), jnp.float32)),
        in_specs=[vmem] * len(inputs),
        out_specs=(vmem, vmem),
        cost_estimate=cost,
        compiler_params=pltpu.CompilerParams(vmem_limit_bytes=32 * 1024 * 1024),
    )(*inputs)
    return h_t, c_t


# ---------------------------------------------------------------------------
# Sequence rollout kernel: weights VMEM-resident, h/c carried in scratch,
# non-recurrent x-path hoisted, T blocked into an in-kernel fori_loop.
# ---------------------------------------------------------------------------
def lstm_seq_kernel(gx_ref, h0_ref, c0_ref, w_hh_ref, hid_p_ref,
                    h_seq_ref, c_fin_ref, h_sc, c_sc, *, unroll):
    b = pl.program_id(0)        # batch-tile index ("parallel")
    tb = pl.program_id(1)       # time-block index ("arbitrary")
    Bt, H = h0_ref.shape
    t_block = gx_ref.shape[0]

    @pl.when(tb == 0)
    def _():
        h_sc[b] = h0_ref[...]
        c_sc[b] = c0_ref[...]

    # Hoist loop-invariant values out of the recurrence (JAX does not CSE
    # broadcast_in_dim, so bind the broadcasts once here).
    hp = hid_p_ref[...]
    lnc_g = jnp.broadcast_to(hp[0:1], (Bt, H))
    lnc_b = jnp.broadcast_to(hp[1:2], (Bt, H))
    lnh_g = jnp.broadcast_to(hp[2:3], (Bt, H))
    lnh_b = jnp.broadcast_to(hp[3:4], (Bt, H))
    w_hh = w_hh_ref[...]
    wd = w_hh.dtype

    def step(i, carry):
        h_prev, c_prev = carry
        # gx already holds LN_x(x@W_ih + b_ih) with b_hh folded into its beta
        # (possibly stored in bf16 -> cast; accumulation stays f32).
        gates = gx_ref[i].astype(jnp.float32) + jnp.dot(
            h_prev.astype(wd), w_hh, preferred_element_type=jnp.float32)

        # Packed order [i|f|o|g]: single sigmoid over contiguous 3H slice.
        sig = jax.nn.sigmoid(gates[:, :3 * H])
        i_t = sig[:, :H]
        f_t = sig[:, H:2 * H]
        o_t = sig[:, 2 * H:3 * H]
        g_t = jnp.tanh(gates[:, 3 * H:])

        c_t = _layer_norm_fast(f_t * c_prev + i_t * g_t, lnc_g, lnc_b)
        h_t = _layer_norm_fast(o_t * jnp.tanh(c_t), lnh_g, lnh_b)

        h_seq_ref[i] = h_t.astype(h_seq_ref.dtype)
        return h_t, c_t

    h_last, c_last = jax.lax.fori_loop(
        0, t_block, step, (h_sc[b], c_sc[b]), unroll=unroll)

    h_sc[b] = h_last
    c_sc[b] = c_last

    # Only the final cell state is emitted (halves output write-back DMA).
    @pl.when(tb == pl.num_programs(1) - 1)
    def _():
        c_fin_ref[...] = c_last.astype(c_fin_ref.dtype)


def precompute_gates_x(x_seq, packed, out_dtype=jnp.float32):
    """Batched x-path over all timesteps (no sequential dependence): one big matmul."""
    w = packed["w_ih_t"]
    gp = packed["gate_params"]
    T, B, I = x_seq.shape
    xf = x_seq.reshape(T * B, I).astype(w.dtype)
    pre = jnp.dot(xf, w, preferred_element_type=jnp.float32) + gp[0:1]
    gx = _layer_norm_ref(pre, gp[1:2], gp[2:3])   # beta already includes b_hh
    return gx.reshape(T, B, -1).astype(out_dtype)


def lstm_sequence_pallas(x_seq, h0, c0, packed, *, t_block=None, b_tile=None,
                         gx_dtype=jnp.float32):
    T, B, I = x_seq.shape
    H = h0.shape[1]
    H4 = 4 * H
    assert H % 128 == 0 and B % 8 == 0, "H must be multiple of 128, B multiple of 8"

    if t_block is None:
        t_block = T if T <= 32 else 32
    if b_tile is None:
        b_tile = B
    assert T % t_block == 0, "T must be a multiple of t_block"
    assert B % b_tile == 0, "B must be a multiple of b_tile"
    n_b = B // b_tile
    n_t = T // t_block
    unroll = t_block <= 8

    gx_seq = precompute_gates_x(x_seq, packed, out_dtype=gx_dtype)   # (T, B, 4H)

    w_hh = packed["w_hh_t"]
    hid_p = packed["hid_params"]

    bytes_accessed = (int(gx_seq.size) * gx_seq.dtype.itemsize
                      + int(w_hh.size) * w_hh.dtype.itemsize
                      + int(hid_p.size) * hid_p.dtype.itemsize
                      + 2 * B * H * 4          # h0, c0
                      + T * B * H * 4          # h_seq out
                      + B * H * 4)             # c_final out
    cost = pl.CostEstimate(
        flops=2 * T * B * H * H4 + 40 * T * B * H,
        transcendentals=5 * T * B * H,
        bytes_accessed=bytes_accessed,
    )

    grid_spec = pltpu.PrefetchScalarGridSpec(
        num_scalar_prefetch=0,
        grid=(n_b, n_t),
        in_specs=[
            pl.BlockSpec((t_block, b_tile, H4), lambda b, t: (t, b, 0)),  # x-path gates
            pl.BlockSpec((b_tile, H), lambda b, t: (b, 0)),               # h0
            pl.BlockSpec((b_tile, H), lambda b, t: (b, 0)),               # c0
            pl.BlockSpec((H, H4), lambda b, t: (0, 0)),                   # W_hh^T (resident)
            pl.BlockSpec((4, H), lambda b, t: (0, 0)),                    # LN c/h params
        ],
        out_specs=(
            pl.BlockSpec((t_block, b_tile, H), lambda b, t: (t, b, 0)),   # h_seq
            pl.BlockSpec((b_tile, H), lambda b, t: (b, 0)),               # c_final
        ),
        scratch_shapes=[pltpu.VMEM((n_b, b_tile, H), jnp.float32),        # h carry
                        pltpu.VMEM((n_b, b_tile, H), jnp.float32)],       # c carry
    )

    h_seq, c_final = pl.pallas_call(
        functools.partial(lstm_seq_kernel, unroll=unroll),
        out_shape=(jax.ShapeDtypeStruct((T, B, H), jnp.float32),
                   jax.ShapeDtypeStruct((B, H), jnp.float32)),
        grid_spec=grid_spec,
        cost_estimate=cost,
        compiler_params=pltpu.CompilerParams(
            dimension_semantics=("parallel", "arbitrary"),
            vmem_limit_bytes=32 * 1024 * 1024),
    )(gx_seq, h0, c0, w_hh, hid_p)
    return h_seq, c_final


# ---------------------------------------------------------------------------
# Parameter init / packing / pure-JAX reference
# ---------------------------------------------------------------------------
def init_params(key, input_size, hidden_size):
    H = hidden_size
    k1, k2, k3, k4 = jax.random.split(key, 4)

    # Orthogonal init (as in nn.init.orthogonal_): orthonormal columns via QR.
    w_ih = jnp.linalg.qr(jax.random.normal(k1, (4 * H, input_size), jnp.float32))[0]
    w_hh = jnp.linalg.qr(jax.random.normal(k2, (4 * H, H), jnp.float32))[0]

    b_ih = jax.random.uniform(k3, (4 * H,), jnp.float32, -0.05, 0.05)
    b_hh = jax.random.uniform(k4, (4 * H,), jnp.float32, -0.05, 0.05)
    b_ih = b_ih.at[H:2 * H].set(1.0)   # forget-gate bias = 1.0
    b_hh = b_hh.at[H:2 * H].set(1.0)

    return {
        "w_ih_t": w_ih.T,                       # (input_size, 4H), torch order [i|f|g|o]
        "w_hh_t": w_hh.T,                       # (H, 4H)
        "b_ih": b_ih.reshape(1, 4 * H),
        "b_hh": b_hh.reshape(1, 4 * H),
        "lnx_g": jnp.ones((1, 4 * H), jnp.float32),
        "lnx_b": jnp.zeros((1, 4 * H), jnp.float32),
        "lnc_g": jnp.ones((1, H), jnp.float32),
        "lnc_b": jnp.zeros((1, H), jnp.float32),
        "lnh_g": jnp.ones((1, H), jnp.float32),
        "lnh_b": jnp.zeros((1, H), jnp.float32),
    }


def _reorder_gates(a, axis=-1):
    """Exact host-side permutation of the 4H gate axis: [i|f|g|o] -> [i|f|o|g]."""
    i_, f_, g_, o_ = jnp.split(a, 4, axis=axis)
    return jnp.concatenate([i_, f_, o_, g_], axis=axis)


def pack_params(params, weight_dtype=jnp.float32):
    """Reorder gates to [i|f|o|g], pack the 1-row params, fold b_hh into lnx_b (exact)."""
    w_ih_t = _reorder_gates(params["w_ih_t"])
    w_hh_t = _reorder_gates(params["w_hh_t"])
    b_ih = _reorder_gates(params["b_ih"])
    b_hh = _reorder_gates(params["b_hh"])
    lnx_g = _reorder_gates(params["lnx_g"])
    lnx_b = _reorder_gates(params["lnx_b"])

    H4 = b_ih.shape[-1]
    H = params["lnc_g"].shape[-1]
    gate_params = jnp.concatenate(
        [b_ih, lnx_g, lnx_b + b_hh], axis=0).reshape(3, H4).astype(jnp.float32)
    hid_params = jnp.concatenate(
        [params["lnc_g"], params["lnc_b"],
         params["lnh_g"], params["lnh_b"]], axis=0).reshape(4, H).astype(jnp.float32)
    return {
        "w_ih_t": w_ih_t.astype(weight_dtype),   # (input_size, 4H) [i|f|o|g]
        "w_hh_t": w_hh_t.astype(weight_dtype),   # (H, 4H)          [i|f|o|g]
        "gate_params": gate_params,              # (3, 4H) f32
        "hid_params": hid_params,                # (4, H)  f32
    }


def lstm_cell_ref(x, h_prev, c_prev, p):
    """Pure-JAX reference matching the PyTorch forward (unpacked params, torch order)."""
    H = h_prev.shape[1]
    gates_x = x @ p["w_ih_t"] + p["b_ih"]
    gates_h = h_prev @ p["w_hh_t"] + p["b_hh"]
    gates_x = _layer_norm_ref(gates_x, p["lnx_g"], p["lnx_b"])
    gates = gates_x + gates_h
    i_g, f_g, g_g, o_g = (gates[:, k * H:(k + 1) * H] for k in range(4))
    c_t = jax.nn.sigmoid(f_g) * c_prev + jax.nn.sigmoid(i_g) * jnp.tanh(g_g)
    c_t = _layer_norm_ref(c_t, p["lnc_g"], p["lnc_b"])
    h_t = jax.nn.sigmoid(o_g) * jnp.tanh(c_t)
    h_t = _layer_norm_ref(h_t, p["lnh_g"], p["lnh_b"])
    return h_t, c_t


def lstm_sequence_ref(x_seq, h0, c0, params):
    def step(carry, x_t):
        h, c = lstm_cell_ref(x_t, carry[0], carry[1], params)
        return (h, c), (h, c)
    _, (h_seq, c_seq) = jax.lax.scan(step, (h0, c0), x_seq)
    return h_seq, c_seq


# ---------------------------------------------------------------------------
if __name__ == "__main__":
    B, INPUT_SIZE, HIDDEN_SIZE, T = 8, 64, 128, 8

    key = jax.random.PRNGKey(0)
    kp, kx, kh, kc, ks = jax.random.split(key, 5)

    params = init_params(kp, INPUT_SIZE, HIDDEN_SIZE)
    packed_f32 = pack_params(params, jnp.float32)
    packed_bf16 = pack_params(params, jnp.bfloat16)

    x = jax.random.normal(kx, (B, INPUT_SIZE), jnp.float32)
    h_prev = jax.random.normal(kh, (B, HIDDEN_SIZE), jnp.float32)
    c_prev = jax.random.normal(kc, (B, HIDDEN_SIZE), jnp.float32)

    # --- single step (f32 weights): matches the PyTorch module exactly ------
    h_t, c_t = lstm_cell_pallas(x, h_prev, c_prev, packed_f32)
    jax.block_until_ready((h_t, c_t))
    h_ref, c_ref = lstm_cell_ref(x, h_prev, c_prev, params)
    assert h_t.shape == (B, HIDDEN_SIZE) and c_t.shape == (B, HIDDEN_SIZE)
    assert jnp.allclose(h_t, h_ref, atol=1e-4, rtol=1e-4)
    assert jnp.allclose(c_t, c_ref, atol=1e-4, rtol=1e-4)

    # --- single step with bf16 weights (fast MXU path on all generations) ----
    h_b, c_b = lstm_cell_pallas(x, h_prev, c_prev, packed_bf16)
    jax.block_until_ready((h_b, c_b))
    assert jnp.allclose(h_b, h_ref, atol=5e-2, rtol=5e-2)
    assert jnp.allclose(c_b, c_ref, atol=5e-2, rtol=5e-2)

    # --- sequence rollout, f32 weights/gx, T blocked into 2 grid steps -------
    # (exercises the h/c carry across time blocks)
    x_seq = jax.random.normal(ks, (T, B, INPUT_SIZE), jnp.float32)
    h_seq_ref, c_seq_ref = lstm_sequence_ref(x_seq, h_prev, c_prev, params)

    h_seq, c_fin = lstm_sequence_pallas(x_seq, h_prev, c_prev, packed_f32,
                                        t_block=4)
    jax.block_until_ready((h_seq, c_fin))
    assert jnp.allclose(h_seq, h_seq_ref, atol=1e-4, rtol=1e-4)
    assert jnp.allclose(c_fin, c_seq_ref[-1], atol=1e-4, rtol=1e-4)

    # --- sequence rollout, bf16 weights + bf16 gx (halved HBM stream) --------
    h_seq_b, c_fin_b = lstm_sequence_pallas(x_seq, h_prev, c_prev, packed_bf16,
                                            t_block=T, gx_dtype=jnp.bfloat16)
    jax.block_until_ready((h_seq_b, c_fin_b))
    assert jnp.allclose(h_seq_b, h_seq_ref, atol=1e-1, rtol=1e-1)
    assert jnp.allclose(c_fin_b, c_seq_ref[-1], atol=1e-1, rtol=1e-1)

    print("KERNEL_OK")
</pallas_src>

<mosaic_0001>
module attributes {stable_mosaic.version = 11 : i64} {
  func.func @lstm_cell_kernel(%arg0: memref<8x64xf32, #tpu.memory_space<vmem>>, %arg1: memref<8x128xf32, #tpu.memory_space<vmem>>, %arg2: memref<8x128xf32, #tpu.memory_space<vmem>>, %arg3: memref<64x512xf32, #tpu.memory_space<vmem>>, %arg4: memref<128x512xf32, #tpu.memory_space<vmem>>, %arg5: memref<3x512xf32, #tpu.memory_space<vmem>>, %arg6: memref<4x128xf32, #tpu.memory_space<vmem>>, %arg7: memref<8x128xf32, #tpu.memory_space<vmem>>, %arg8: memref<8x128xf32, #tpu.memory_space<vmem>>) attributes {dimension_semantics = [], scalar_prefetch = 0 : i64, scratch_operands = 0 : i64, tpu.core_type = #tpu.core_type<tc>} {
    %c0 = arith.constant 0 : index
    %c0_0 = arith.constant 0 : index
    %0 = vector.load %arg0[%c0, %c0_0] : memref<8x64xf32, #tpu.memory_space<vmem>>, vector<8x64xf32>
    %c0_1 = arith.constant 0 : index
    %c0_2 = arith.constant 0 : index
    %1 = vector.load %arg1[%c0_1, %c0_2] : memref<8x128xf32, #tpu.memory_space<vmem>>, vector<8x128xf32>
    %c0_3 = arith.constant 0 : index
    %c0_4 = arith.constant 0 : index
    %2 = vector.load %arg2[%c0_3, %c0_4] : memref<8x128xf32, #tpu.memory_space<vmem>>, vector<8x128xf32>
    %c0_5 = arith.constant 0 : index
    %c0_6 = arith.constant 0 : index
    %3 = vector.load %arg5[%c0_5, %c0_6] : memref<3x512xf32, #tpu.memory_space<vmem>>, vector<3x512xf32>
    %c0_7 = arith.constant 0 : index
    %c0_8 = arith.constant 0 : index
    %4 = vector.load %arg6[%c0_7, %c0_8] : memref<4x128xf32, #tpu.memory_space<vmem>>, vector<4x128xf32>
    %c0_9 = arith.constant 0 : index
    %c0_10 = arith.constant 0 : index
    %5 = vector.load %arg3[%c0_9, %c0_10] : memref<64x512xf32, #tpu.memory_space<vmem>>, vector<64x512xf32>
    %cst = arith.constant dense<0.000000e+00> : vector<8x512xf32>
    %6 = tpu.matmul %0, %5, %cst {dimension_numbers = #tpu.dot_dimension_numbers<[1], [0], [0], [1], [0, 0, 1, 1], [], []>} : vector<8x64xf32>, vector<64x512xf32>, vector<8x512xf32> -> vector<8x512xf32>
    %7 = vector.extract_strided_slice %3 {offsets = [0, 0], sizes = [1, 512], strides = [1, 1]} : vector<3x512xf32> to vector<1x512xf32>
    %8 = vector.broadcast %7 : vector<1x512xf32> to vector<8x512xf32>
    %9 = arith.addf %6, %8 : vector<8x512xf32>
    %10 = vector.extract_strided_slice %3 {offsets = [1, 0], sizes = [1, 512], strides = [1, 1]} : vector<3x512xf32> to vector<1x512xf32>
    %11 = vector.extract_strided_slice %3 {offsets = [2, 0], sizes = [1, 512], strides = [1, 1]} : vector<3x512xf32> to vector<1x512xf32>
    %cst_11 = arith.constant dense<0.000000e+00> : vector<8xf32>
    %12 = vector.multi_reduction <add>, %9, %cst_11 [1] : vector<8x512xf32> to vector<8xf32>
    %13 = vector.shape_cast %12 : vector<8xf32> to vector<8x1xf32>
    %14 = arith.mulf %9, %9 : vector<8x512xf32>
    %cst_12 = arith.constant dense<0.000000e+00> : vector<8xf32>
    %15 = vector.multi_reduction <add>, %14, %cst_12 [1] : vector<8x512xf32> to vector<8xf32>
    %16 = vector.shape_cast %15 : vector<8xf32> to vector<8x1xf32>
    %cst_13 = arith.constant 0.001953125 : f32
    %17 = vector.broadcast %cst_13 : f32 to vector<8x1xf32>
    %18 = arith.mulf %13, %17 : vector<8x1xf32>
    %cst_14 = arith.constant 0.001953125 : f32
    %19 = vector.broadcast %cst_14 : f32 to vector<8x1xf32>
    %20 = arith.mulf %16, %19 : vector<8x1xf32>
    %21 = arith.mulf %18, %18 : vector<8x1xf32>
    %22 = arith.subf %20, %21 : vector<8x1xf32>
    %cst_15 = arith.constant 0.000000e+00 : f32
    %23 = vector.broadcast %cst_15 : f32 to vector<8x1xf32>
    %24 = arith.maximumf %22, %23 : vector<8x1xf32>
    %25 = vector.broadcast %18 : vector<8x1xf32> to vector<8x512xf32>
    %26 = arith.subf %9, %25 : vector<8x512xf32>
    %cst_16 = arith.constant 9.99999974E-6 : f32
    %27 = vector.broadcast %cst_16 : f32 to vector<8x1xf32>
    %28 = arith.addf %24, %27 : vector<8x1xf32>
    %29 = math.rsqrt %28 : vector<8x1xf32>
    %30 = vector.broadcast %29 : vector<8x1xf32> to vector<8x512xf32>
    %31 = arith.mulf %26, %30 : vector<8x512xf32>
    %32 = vector.broadcast %10 : vector<1x512xf32> to vector<8x512xf32>
    %33 = arith.mulf %31, %32 : vector<8x512xf32>
    %34 = vector.broadcast %11 : vector<1x512xf32> to vector<8x512xf32>
    %35 = arith.addf %33, %34 : vector<8x512xf32>
    %c0_17 = arith.constant 0 : index
    %c0_18 = arith.constant 0 : index
    %36 = vector.load %arg4[%c0_17, %c0_18] : memref<128x512xf32, #tpu.memory_space<vmem>>, vector<128x512xf32>
    %cst_19 = arith.constant dense<0.000000e+00> : vector<8x512xf32>
    %37 = tpu.matmul %1, %36, %cst_19 {dimension_numbers = #tpu.dot_dimension_numbers<[1], [0], [0], [1], [0, 0, 1, 1], [], []>} : vector<8x128xf32>, vector<128x512xf32>, vector<8x512xf32> -> vector<8x512xf32>
    %38 = arith.addf %35, %37 : vector<8x512xf32>
    %39 = vector.extract_strided_slice %38 {offsets = [0, 0], sizes = [8, 384], strides = [1, 1]} : vector<8x512xf32> to vector<8x384xf32>
    %40 = arith.negf %39 : vector<8x384xf32>
    %41 = math.exp %40 : vector<8x384xf32>
    %cst_20 = arith.constant 1.000000e+00 : f32
    %42 = vector.broadcast %cst_20 : f32 to vector<8x384xf32>
    %43 = arith.addf %42, %41 : vector<8x384xf32>
    %44 = arith.divf %42, %43 : vector<8x384xf32>
    %45 = vector.extract_strided_slice %44 {offsets = [0, 0], sizes = [8, 128], strides = [1, 1]} : vector<8x384xf32> to vector<8x128xf32>
    %46 = vector.extract_strided_slice %44 {offsets = [0, 128], sizes = [8, 128], strides = [1, 1]} : vector<8x384xf32> to vector<8x128xf32>
    %47 = vector.extract_strided_slice %44 {offsets = [0, 256], sizes = [8, 128], strides = [1, 1]} : vector<8x384xf32> to vector<8x128xf32>
    %48 = vector.extract_strided_slice %38 {offsets = [0, 384], sizes = [8, 128], strides = [1, 1]} : vector<8x512xf32> to vector<8x128xf32>
    %49 = math.tanh %48 : vector<8x128xf32>
    %50 = arith.mulf %46, %2 : vector<8x128xf32>
    %51 = arith.mulf %45, %49 : vector<8x128xf32>
    %52 = arith.addf %50, %51 : vector<8x128xf32>
    %53 = vector.extract_strided_slice %4 {offsets = [0, 0], sizes = [1, 128], strides = [1, 1]} : vector<4x128xf32> to vector<1x128xf32>
    %54 = vector.extract_strided_slice %4 {offsets = [1, 0], sizes = [1, 128], strides = [1, 1]} : vector<4x128xf32> to vector<1x128xf32>
    %cst_21 = arith.constant dense<0.000000e+00> : vector<8xf32>
    %55 = vector.multi_reduction <add>, %52, %cst_21 [1] : vector<8x128xf32> to vector<8xf32>
    %56 = vector.shape_cast %55 : vector<8xf32> to vector<8x1xf32>
    %57 = arith.mulf %52, %52 : vector<8x128xf32>
    %cst_22 = arith.constant dense<0.000000e+00> : vector<8xf32>
    %58 = vector.multi_reduction <add>, %57, %cst_22 [1] : vector<8x128xf32> to vector<8xf32>
    %59 = vector.shape_cast %58 : vector<8xf32> to vector<8x1xf32>
    %cst_23 = arith.constant 7.812500e-03 : f32
    %60 = vector.broadcast %cst_23 : f32 to vector<8x1xf32>
    %61 = arith.mulf %56, %60 : vector<8x1xf32>
    %cst_24 = arith.constant 7.812500e-03 : f32
    %62 = vector.broadcast %cst_24 : f32 to vector<8x1xf32>
    %63 = arith.mulf %59, %62 : vector<8x1xf32>
    %64 = arith.mulf %61, %61 : vector<8x1xf32>
    %65 = arith.subf %63, %64 : vector<8x1xf32>
    %cst_25 = arith.constant 0.000000e+00 : f32
    %66 = vector.broadcast %cst_25 : f32 to vector<8x1xf32>
    %67 = arith.maximumf %65, %66 : vector<8x1xf32>
    %68 = vector.broadcast %61 : vector<8x1xf32> to vector<8x128xf32>
    %69 = arith.subf %52, %68 : vector<8x128xf32>
    %cst_26 = arith.constant 9.99999974E-6 : f32
    %70 = vector.broadcast %cst_26 : f32 to vector<8x1xf32>
    %71 = arith.addf %67, %70 : vector<8x1xf32>
    %72 = math.rsqrt %71 : vector<8x1xf32>
    %73 = vector.broadcast %72 : vector<8x1xf32> to vector<8x128xf32>
    %74 = arith.mulf %69, %73 : vector<8x128xf32>
    %75 = vector.broadcast %53 : vector<1x128xf32> to vector<8x128xf32>
    %76 = arith.mulf %74, %75 : vector<8x128xf32>
    %77 = vector.broadcast %54 : vector<1x128xf32> to vector<8x128xf32>
    %78 = arith.addf %76, %77 : vector<8x128xf32>
    %79 = math.tanh %78 : vector<8x128xf32>
    %80 = arith.mulf %47, %79 : vector<8x128xf32>
    %81 = vector.extract_strided_slice %4 {offsets = [2, 0], sizes = [1, 128], strides = [1, 1]} : vector<4x128xf32> to vector<1x128xf32>
    %82 = vector.extract_strided_slice %4 {offsets = [3, 0], sizes = [1, 128], strides = [1, 1]} : vector<4x128xf32> to vector<1x128xf32>
    %cst_27 = arith.constant dense<0.000000e+00> : vector<8xf32>
    %83 = vector.multi_reduction <add>, %80, %cst_27 [1] : vector<8x128xf32> to vector<8xf32>
    %84 = vector.shape_cast %83 : vector<8xf32> to vector<8x1xf32>
    %85 = arith.mulf %80, %80 : vector<8x128xf32>
    %cst_28 = arith.constant dense<0.000000e+00> : vector<8xf32>
    %86 = vector.multi_reduction <add>, %85, %cst_28 [1] : vector<8x128xf32> to vector<8xf32>
    %87 = vector.shape_cast %86 : vector<8xf32> to vector<8x1xf32>
    %cst_29 = arith.constant 7.812500e-03 : f32
    %88 = vector.broadcast %cst_29 : f32 to vector<8x1xf32>
    %89 = arith.mulf %84, %88 : vector<8x1xf32>
    %cst_30 = arith.constant 7.812500e-03 : f32
    %90 = vector.broadcast %cst_30 : f32 to vector<8x1xf32>
    %91 = arith.mulf %87, %90 : vector<8x1xf32>
    %92 = arith.mulf %89, %89 : vector<8x1xf32>
    %93 = arith.subf %91, %92 : vector<8x1xf32>
    %cst_31 = arith.constant 0.000000e+00 : f32
    %94 = vector.broadcast %cst_31 : f32 to vector<8x1xf32>
    %95 = arith.maximumf %93, %94 : vector<8x1xf32>
    %96 = vector.broadcast %89 : vector<8x1xf32> to vector<8x128xf32>
    %97 = arith.subf %80, %96 : vector<8x128xf32>
    %cst_32 = arith.constant 9.99999974E-6 : f32
    %98 = vector.broadcast %cst_32 : f32 to vector<8x1xf32>
    %99 = arith.addf %95, %98 : vector<8x1xf32>
    %100 = math.rsqrt %99 : vector<8x1xf32>
    %101 = vector.broadcast %100 : vector<8x1xf32> to vector<8x128xf32>
    %102 = arith.mulf %97, %101 : vector<8x128xf32>
    %103 = vector.broadcast %81 : vector<1x128xf32> to vector<8x128xf32>
    %104 = arith.mulf %102, %103 : vector<8x128xf32>
    %105 = vector.broadcast %82 : vector<1x128xf32> to vector<8x128xf32>
    %106 = arith.addf %104, %105 : vector<8x128xf32>
    %c0_33 = arith.constant 0 : index
    %c0_34 = arith.constant 0 : index
    %107 = vector.load %arg7[%c0_33, %c0_34] : memref<8x128xf32, #tpu.memory_space<vmem>>, vector<8x128xf32>
    tpu.vector_store %arg7[%c0_33, %c0_34], %106 {strides = array<i32>} : memref<8x128xf32, #tpu.memory_space<vmem>>, vector<8x128xf32>,
    %c0_35 = arith.constant 0 : index
    %c0_36 = arith.constant 0 : index
    %108 = vector.load %arg8[%c0_35, %c0_36] : memref<8x128xf32, #tpu.memory_space<vmem>>, vector<8x128xf32>
    tpu.vector_store %arg8[%c0_35, %c0_36], %78 {strides = array<i32>} : memref<8x128xf32, #tpu.memory_space<vmem>>, vector<8x128xf32>,
    return
  }
}

</mosaic_0001>

<llo_original>
// kernel: tpu_custom_call.1
$region0: #{tpu_custom_call.1}
  #allocation0 [shape = 'u32[]', space=smem, size = 0x4, offset = 0x4, fixed_abs, tag = 'smem constant byte address 0x4 - core index']
  #allocation1 [shape = 'u32[72,128]{1,0:T(1,128)}', space=vmem, size = 0x9000, scoped, tag = 'internal scratch']
  %s0 = inlined_call_operand.hbm [shape: f32[8,64], index: 0, kind: input, shape index: {}]
  %s1 = inlined_call_operand.hbm [shape: f32[8,128], index: 1, kind: input, shape index: {}]
  %s2 = inlined_call_operand.hbm [shape: f32[8,128], index: 2, kind: input, shape index: {}]
  %s3 = inlined_call_operand.hbm [shape: f32[64,512], index: 3, kind: input, shape index: {}]
  %s4 = inlined_call_operand.hbm [shape: f32[128,512], index: 4, kind: input, shape index: {}]
  %s5 = inlined_call_operand.hbm [shape: f32[3,512], index: 5, kind: input, shape index: {}]
  %s6 = inlined_call_operand.vmem [shape: f32[4,128], index: 6, kind: input, shape index: {}]
  %s7 = inlined_call_operand.hbm [shape: f32[8,128], index: 7, kind: output, shape index: {0}]
  %s8 = inlined_call_operand.hbm [shape: f32[8,128], index: 8, kind: output, shape index: {1}]
  %9 = xla_tuple %s7, %s8
  %s10 = sld [smem:[#allocation0]]
  $region70: #{tpu_custom_call.1} parent=0
    _
  %s12 = ssub.s32 1, %s10
  %s13 = scalar_select 0, %s12, %s10
  $region1: #{tpu_custom_call.1} parent=0
    #allocation2 [shape = 'u8[4096]{0}', space=vmem, size = 0x1000, scoped, tag = 'input window, operand 0, single buffered']
    #allocation3 [shape = 's32[1]{0}', space=sflag, size = 0x4, scoped, tag = 'scoped memory for tpu_custom_call.1']
    #allocation4 [shape = 's32[1]{0}', space=sflag, size = 0x4, scoped, tag = 'scoped memory for tpu_custom_call.1']
    #allocation5 [shape = 'u8[4096]{0}', space=vmem, size = 0x1000, scoped, tag = 'input window, operand 1, single buffered']
    #allocation6 [shape = 's32[1]{0}', space=sflag, size = 0x4, scoped, tag = 'scoped memory for tpu_custom_call.1']
    #allocation7 [shape = 'u8[4096]{0}', space=vmem, size = 0x1000, scoped, tag = 'input window, operand 2, single buffered']
    #allocation8 [shape = 'u8[131072]{0}', space=vmem, size = 0x20000, scoped, tag = 'input window, operand 3, single buffered']
    #allocation9 [shape = 's32[1]{0}', space=sflag, size = 0x4, scoped, tag = 'scoped memory for tpu_custom_call.1']
    #allocation10 [shape = 'u8[262144]{0}', space=vmem, size = 0x40000, scoped, tag = 'input window, operand 4, single buffered']
    #allocation11 [shape = 'u8[8192]{0}', space=vmem, size = 0x2000, scoped, tag = 'input window, operand 5, single buffered']
    #allocation12 [shape = 's32[1]{0}', space=sflag, size = 0x4, scoped, tag = 'scoped memory for tpu_custom_call.1']
    #allocation13 [shape = 'u8[4096]{0}', space=vmem, size = 0x1000, scoped, tag = 'output window, operand 0, single buffered']
    #allocation14 [shape = 'u8[4096]{0}', space=vmem, size = 0x1000, scoped, tag = 'output window, operand 1, single buffered']
    #allocation15 [shape = 's32[1]{0}', space=sflag, size = 0x4, scoped, tag = 'scoped memory for tpu_custom_call.1']
    %14 = vsyncpa [#allocation3], 0
    %15 = vsyncpa [#allocation6], 0
    %16 = vsyncpa [#allocation9], 0
    %17 = vsyncpa [#allocation12], 0
    %18 = vsyncpa [#allocation4], 0
    %19 = vsyncpa [#allocation15], 0
    // Predicated region
    $region2: #{tpu_custom_call.1} parent=1 // pred_check
      _
    $region3: #{tpu_custom_call.1} parent=1 // pred_check_branch
      %21 = sbr.rel (0) target = $region5
    $region4: #{tpu_custom_call.1} parent=1 // pred_region
      %23 = vsyncadd [#allocation3], 0
      %s25 = sshll.u32 %s0, 4
      %s26 = int_to_ptr.hbm [resolvable:$true] %s25
      %s27 = sshll.u32 [#allocation2], 4
      %s28 = int_to_ptr.vmem [resolvable:$true] %s27
      %30 = dma.hbm_to_vmem [thread:$0]  %s26, 128, %s28, [#allocation3]
    $region5: #{tpu_custom_call.1} parent=1 // pred_fallthru
      _
    // Predicated region
    $region6: #{tpu_custom_call.1} parent=1 // pred_check
      _
    $region7: #{tpu_custom_call.1} parent=1 // pred_check_branch
      %32 = sbr.rel (0) target = $region9
    $region8: #{tpu_custom_call.1} parent=1 // pred_region
      %34 = vsyncadd [#allocation6], 0
      %s36 = sshll.u32 %s1, 4
      %s37 = int_to_ptr.hbm [resolvable:$true] %s36
      %s38 = sshll.u32 [#allocation5], 4
      %s39 = int_to_ptr.vmem [resolvable:$true] %s38
      %41 = dma.hbm_to_vmem [thread:$0]  %s37, 128, %s39, [#allocation6]
    $region9: #{tpu_custom_call.1} parent=1 // pred_fallthru
      _
    // Predicated region
    $region10: #{tpu_custom_call.1} parent=1 // pred_check
      _
    $region11: #{tpu_custom_call.1} parent=1 // pred_check_branch
      %43 = sbr.rel (0) target = $region13
    $region12: #{tpu_custom_call.1} parent=1 // pred_region
      %45 = vsyncadd [#allocation6], 0
      %s47 = sshll.u32 %s2, 4
      %s48 = int_to_ptr.hbm [resolvable:$true] %s47
      %s49 = sshll.u32 [#allocation7], 4
      %s50 = int_to_ptr.vmem [resolvable:$true] %s49
      %52 = dma.hbm_to_vmem [thread:$0]  %s48, 128, %s50, [#allocation6]
    $region13: #{tpu_custom_call.1} parent=1 // pred_fallthru
      _
    // Predicated region
    $region14: #{tpu_custom_call.1} parent=1 // pred_check
      _
    $region15: #{tpu_custom_call.1} parent=1 // pred_check_branch
      %54 = sbr.rel (0) target = $region17
    $region16: #{tpu_custom_call.1} parent=1 // pred_region
      %56 = vsyncadd [#allocation9], 0
      %s57 = sshll.u32 %s3, 4
      %s58 = int_to_ptr.hbm [resolvable:$true] %s57
      %s59 = sshll.u32 [#allocation8], 4
      %s60 = int_to_ptr.vmem [resolvable:$true] %s59
      %65 = dma.hbm_to_vmem [thread:$0]  %s58, 4096, %s60, [#allocation9], 512, 512, 32
    $region17: #{tpu_custom_call.1} parent=1 // pred_fallthru
      _
    // Predicated region
    $region18: #{tpu_custom_call.1} parent=1 // pred_check
      _
    $region19: #{tpu_custom_call.1} parent=1 // pred_check_branch
      %67 = sbr.rel (0) target = $region21
    $region20: #{tpu_custom_call.1} parent=1 // pred_region
      %69 = vsyncadd [#allocation9], 0
      %s70 = sshll.u32 %s4, 4
      %s71 = int_to_ptr.hbm [resolvable:$true] %s70
      %s72 = sshll.u32 [#allocation10], 4
      %s73 = int_to_ptr.vmem [resolvable:$true] %s72
      %78 = dma.hbm_to_vmem [thread:$0]  %s71, 8192, %s73, [#allocation9], 512, 512, 32
    $region21: #{tpu_custom_call.1} parent=1 // pred_fallthru
      _
    // Predicated region
    $region22: #{tpu_custom_call.1} parent=1 // pred_check
      _
    $region23: #{tpu_custom_call.1} parent=1 // pred_check_branch
      %80 = sbr.rel (0) target = $region25
    $region24: #{tpu_custom_call.1} parent=1 // pred_region
      %82 = vsyncadd [#allocation12], 0
      %s84 = sshll.u32 %s5, 4
      %s85 = int_to_ptr.hbm [resolvable:$true] %s84
      %s86 = sshll.u32 [#allocation11], 4
      %s87 = int_to_ptr.vmem [resolvable:$true] %s86
      %89 = dma.hbm_to_vmem [thread:$0]  %s85, 256, %s87, [#allocation12]
    $region25: #{tpu_custom_call.1} parent=1 // pred_fallthru
      _
    // Predicated region
    $region26: #{tpu_custom_call.1} parent=1 // pred_check
      _
    $region27: #{tpu_custom_call.1} parent=1 // pred_check_branch
      %91 = sbr.rel (0) target = $region29
    $region28: #{tpu_custom_call.1} parent=1 // pred_region
      _
    $region29: #{tpu_custom_call.1} parent=1 // pred_fallthru
      _
    // Predicated region
    $region30: #{tpu_custom_call.1} parent=1 // pred_check
      _
    $region31: #{tpu_custom_call.1} parent=1 // pred_check_branch
      %93 = sbr.rel (0) target = $region33
    $region32: #{tpu_custom_call.1} parent=1 // pred_region
      %95 = dma.done [#allocation3], 128
    $region33: #{tpu_custom_call.1} parent=1 // pred_fallthru
      _
    // Predicated region
    $region34: #{tpu_custom_call.1} parent=1 // pred_check
      _
    $region35: #{tpu_custom_call.1} parent=1 // pred_check_branch
      %97 = sbr.rel (0) target = $region37
    $region36: #{tpu_custom_call.1} parent=1 // pred_region
      %99 = dma.done [#allocation6], 128
    $region37: #{tpu_custom_call.1} parent=1 // pred_fallthru
      _
    // Predicated region
    $region38: #{tpu_custom_call.1} parent=1 // pred_check
      _
    $region39: #{tpu_custom_call.1} parent=1 // pred_check_branch
      %101 = sbr.rel (0) target = $region41
    $region40: #{tpu_custom_call.1} parent=1 // pred_region
      %103 = dma.done [#allocation6], 128
    $region41: #{tpu_custom_call.1} parent=1 // pred_fallthru
      _
    // Predicated region
    $region42: #{tpu_custom_call.1} parent=1 // pred_check
      _
    $region43: #{tpu_custom_call.1} parent=1 // pred_check_branch
      %105 = sbr.rel (0) target = $region45
    $region44: #{tpu_custom_call.1} parent=1 // pred_region
      %107 = dma.done [#allocation9], 4096
    $region45: #{tpu_custom_call.1} parent=1 // pred_fallthru
      _
    // Predicated region
    $region46: #{tpu_custom_call.1} parent=1 // pred_check
      _
    $region47: #{tpu_custom_call.1} parent=1 // pred_check_branch
      %109 = sbr.rel (0) target = $region49
    $region48: #{tpu_custom_call.1} parent=1 // pred_region
      %111 = dma.done [#allocation9], 8192
    $region49: #{tpu_custom_call.1} parent=1 // pred_fallthru
      _
    // Predicated region
    $region50: #{tpu_custom_call.1} parent=1 // pred_check
      _
    $region51: #{tpu_custom_call.1} parent=1 // pred_check_branch
      %113 = sbr.rel (0) target = $region53
    $region52: #{tpu_custom_call.1} parent=1 // pred_region
      %115 = dma.done [#allocation12], 256
    $region53: #{tpu_custom_call.1} parent=1 // pred_fallthru
      _
    %v116 = vld [vmem:[#allocation2] sm:$0xff]
    %v117 = vld [vmem:[#allocation5] sm:$0xff]
    %v118 = vld [vmem:[#allocation7] sm:$0xff]
    %v119 = vld [vmem:[#allocation11] sm:$0x77]
    %v120 = vld [vmem:[#allocation11 + $0x8] sm:$0x77]
    %v121 = vld [vmem:[%s6] sm:$0xf]
    %v122 = vld [vmem:[#allocation8] sm:$0xff]
    %v123 = vld [vmem:[#allocation8 + $0x8] sm:$0xff]
    %v124 = vld [vmem:[#allocation8 + $0x10] sm:$0xff]
    %v125 = vld [vmem:[#allocation8 + $0x18] sm:$0xff]
    %v126 = vld [vmem:[#allocation8 + $0x20] sm:$0xff]
    %v127 = vld [vmem:[#allocation8 + $0x28] sm:$0xff]
    %v128 = vld [vmem:[#allocation8 + $0x30] sm:$0xff]
    %v129 = vld [vmem:[#allocation8 + $0x38] sm:$0xff]
    %v130 = vld [vmem:[#allocation8 + $0x40] sm:$0xff]
    %v131 = vld [vmem:[#allocation8 + $0x48] sm:$0xff]
    %v132 = vld [vmem:[#allocation8 + $0x50] sm:$0xff]
    %v133 = vld [vmem:[#allocation8 + $0x58] sm:$0xff]
    %v134 = vld [vmem:[#allocation8 + $0x60] sm:$0xff]
    %v135 = vld [vmem:[#allocation8 + $0x68] sm:$0xff]
    %v136 = vld [vmem:[#allocation8 + $0x70] sm:$0xff]
    %v137 = vld [vmem:[#allocation8 + $0x78] sm:$0xff]
    %v138 = vld [vmem:[#allocation8 + $0x80] sm:$0xff]
    %v139 = vld [vmem:[#allocation8 + $0x88] sm:$0xff]
    %v140 = vld [vmem:[#allocation8 + $0x90] sm:$0xff]
    %v141 = vld [vmem:[#allocation8 + $0x98] sm:$0xff]
    %v142 = vld [vmem:[#allocation8 + $0xa0] sm:$0xff]
    %v143 = vld [vmem:[#allocation8 + $0xa8] sm:$0xff]
    %v144 = vld [vmem:[#allocation8 + $0xb0] sm:$0xff]
    %v145 = vld [vmem:[#allocation8 + $0xb8] sm:$0xff]
    %v146 = vld [vmem:[#allocation8 + $0xc0] sm:$0xff]
    %v147 = vld [vmem:[#allocation8 + $0xc8] sm:$0xff]
    %v148 = vld [vmem:[#allocation8 + $0xd0] sm:$0xff]
    %v149 = vld [vmem:[#allocation8 + $0xd8] sm:$0xff]
    %v150 = vld [vmem:[#allocation8 + $0xe0] sm:$0xff]
    %v151 = vld [vmem:[#allocation8 + $0xe8] sm:$0xff]
    %v152 = vld [vmem:[#allocation8 + $0xf0] sm:$0xff]
    %v153 = vld [vmem:[#allocation8 + $0xf8] sm:$0xff]
    %v156 = vperm.slane %v119, 0
    %v157 = vperm.slane %v119, 4
    %v158 = vperm.slane %v120, 0
    %v159 = vperm.slane %v120, 4
    %v164 = vperm.slane %v156, 0
    %v165 = vperm.slane %v157, 0
    %v166 = vperm.slane %v158, 0
    %v167 = vperm.slane %v159, 0
    %vm168 = vcmask 523264
    %v170 = vsel %vm168, %v116, 0
    %172 = vmatpush.msra.mxu0 0.0
    %173 = vmatpush.msra.mxu0 0.0
    %174 = vmatpush.msra.mxu0 0.0
    %175 = vmatpush.msra.mxu0 0.0
    %176 = vmatpush.msra.mxu0 0.0
    %177 = vmatpush.msra.mxu0 0.0
    %178 = vmatpush.msra.mxu0 0.0
    %179 = vmatpush.msra.mxu0 0.0
    %180 = vmatpush.msra.mxu0 %v150
    %181 = vmatpush.msra.mxu0 %v146
    %182 = vmatpush.msra.mxu0 %v142
    %183 = vmatpush.msra.mxu0 %v138
    %184 = vmatpush.msra.mxu0 %v134
    %185 = vmatpush.msra.mxu0 %v130
    %186 = vmatpush.msra.mxu0 %v126
    %187 = vmatpush.msra.mxu0 %v122
    %188 = vmatmul.f32.gmra.mxu0 %v170
    %v189 = vpop.f32.mrf.mxu0
    %v190 = vadd.f32 %v164, %v189
    %191 = vdwg.mxu0
    %192 = vmatpush.msra.mxu0 0.0
    %193 = vmatpush.msra.mxu0 0.0
    %194 = vmatpush.msra.mxu0 0.0
    %195 = vmatpush.msra.mxu0 0.0
    %196 = vmatpush.msra.mxu0 0.0
    %197 = vmatpush.msra.mxu0 0.0
    %198 = vmatpush.msra.mxu0 0.0
    %199 = vmatpush.msra.mxu0 0.0
    %200 = vmatpush.msra.mxu0 %v151
    %201 = vmatpush.msra.mxu0 %v147
    %202 = vmatpush.msra.mxu0 %v143
    %203 = vmatpush.msra.mxu0 %v139
    %204 = vmatpush.msra.mxu0 %v135
    %205 = vmatpush.msra.mxu0 %v131
    %206 = vmatpush.msra.mxu0 %v127
    %207 = vmatpush.msra.mxu0 %v123
    %208 = vmatmul.f32.gmra.mxu0 %v170
    %v209 = vpop.f32.mrf.mxu0
    %v210 = vadd.f32 %v165, %v209
    %211 = vdwg.mxu0
    %212 = vmatpush.msra.mxu0 0.0
    %213 = vmatpush.msra.mxu0 0.0
    %214 = vmatpush.msra.mxu0 0.0
    %215 = vmatpush.msra.mxu0 0.0
    %216 = vmatpush.msra.mxu0 0.0
    %217 = vmatpush.msra.mxu0 0.0
    %218 = vmatpush.msra.mxu0 0.0
    %219 = vmatpush.msra.mxu0 0.0
    %220 = vmatpush.msra.mxu0 %v152
    %221 = vmatpush.msra.mxu0 %v148
    %222 = vmatpush.msra.mxu0 %v144
    %223 = vmatpush.msra.mxu0 %v140
    %224 = vmatpush.msra.mxu0 %v136
    %225 = vmatpush.msra.mxu0 %v132
    %226 = vmatpush.msra.mxu0 %v128
    %227 = vmatpush.msra.mxu0 %v124
    %228 = vmatmul.f32.gmra.mxu0 %v170
    %v229 = vpop.f32.mrf.mxu0
    %v230 = vadd.f32 %v166, %v229
    %231 = vdwg.mxu0
    %232 = vmatpush.msra.mxu0 0.0
    %233 = vmatpush.msra.mxu0 0.0
    %234 = vmatpush.msra.mxu0 0.0
    %235 = vmatpush.msra.mxu0 0.0
    %236 = vmatpush.msra.mxu0 0.0
    %237 = vmatpush.msra.mxu0 0.0
    %238 = vmatpush.msra.mxu0 0.0
    %239 = vmatpush.msra.mxu0 0.0
    %240 = vmatpush.msra.mxu0 %v153
    %241 = vmatpush.msra.mxu0 %v149
    %242 = vmatpush.msra.mxu0 %v145
    %243 = vmatpush.msra.mxu0 %v141
    %244 = vmatpush.msra.mxu0 %v137
    %245 = vmatpush.msra.mxu0 %v133
    %246 = vmatpush.msra.mxu0 %v129
    %247 = vmatpush.msra.mxu0 %v125
    %248 = vmatmul.f32.gmra.mxu0 %v170
    %v249 = vpop.f32.mrf.mxu0
    %v250 = vadd.f32 %v167, %v249
    %251 = vdwg.mxu0
    %v252 = vadd.f32 %v190, %v210
    %v253 = vadd.f32 %v252, %v230
    %v254 = vadd.f32 %v253, %v250
    %255 = vadd.xlane.f32.xlu0 %v254
    %v256 = vpop.xlane.xlu0 %255
    %v257 = vmul.f32 %v190, %v190
    %v258 = vmul.f32 %v210, %v210
    %v259 = vmul.f32 %v230, %v230
    %v260 = vmul.f32 %v250, %v250
    %v261 = vadd.f32 %v257, %v258
    %v262 = vadd.f32 %v261, %v259
    %v263 = vadd.f32 %v262, %v260
    %264 = vadd.xlane.f32.xlu0 %v263
    %v265 = vpop.xlane.xlu0 %264
    %v266 = vmul.f32 %v256, 0.001953125
    %v267 = vmul.f32 %v265, 0.001953125
    %v268 = vmul.f32 %v266, %v266
    %v269 = vsub.f32 %v267, %v268
    %v270 = vmax.f32 %v269, 0.0
    %v271 = vsub.f32 %v190, %v266
    %v272 = vsub.f32 %v210, %v266
    %v273 = vsub.f32 %v230, %v266
    %v274 = vsub.f32 %v250, %v266
    %v275 = vadd.f32 %v270, 1e-05
    %v276 = vrsqrt.pop %v275
    %v277 = vmul.f32 %v276, %v275
    %v278 = vmul.f32 %v277, %v276
    %v279 = vmul.f32 0.5, %v278
    %v280 = vsub.f32 1.5, %v279
    %v281 = vmul.f32 %v276, %v280
    %vm282 = vweird.f32 %v275
    %vm283 = vweird.f32 %v276
    %vm284 = vmor %vm282, %vm283
    %v285 = vsel %vm284, %v276, %v281
    %v286 = vmul.f32 %v271, %v285
    %v287 = vmul.f32 %v272, %v285
    %v288 = vmul.f32 %v273, %v285
    %v289 = vmul.f32 %v274, %v285
    %v290 = vperm.slane %v119, 1
    %v291 = vperm.slane %v119, 5
    %v292 = vperm.slane %v120, 1
    %v293 = vperm.slane %v120, 5
    %v298 = vperm.slane %v290, 1
    %v299 = vperm.slane %v291, 1
    %v300 = vperm.slane %v292, 1
    %v301 = vperm.slane %v293, 1
    %v302 = vmul.f32 %v286, %v298
    %v303 = vmul.f32 %v287, %v299
    %v304 = vmul.f32 %v288, %v300
    %v305 = vmul.f32 %v289, %v301
    %v306 = vperm.slane %v119, 2
    %v307 = vperm.slane %v119, 6
    %v308 = vperm.slane %v120, 2
    %v309 = vperm.slane %v120, 6
    %v314 = vperm.slane %v306, 2
    %v315 = vperm.slane %v307, 2
    %v316 = vperm.slane %v308, 2
    %v317 = vperm.slane %v309, 2
    %v318 = vadd.f32 %v302, %v314
    %v319 = vadd.f32 %v303, %v315
    %v320 = vadd.f32 %v304, %v316
    %v321 = vadd.f32 %v305, %v317
    %v322 = vld [vmem:[#allocation10] sm:$0xff]
    %v323 = vld [vmem:[#allocation10 + $0x8] sm:$0xff]
    %v324 = vld [vmem:[#allocation10 + $0x10] sm:$0xff]
    %v325 = vld [vmem:[#allocation10 + $0x18] sm:$0xff]
    %v326 = vld [vmem:[#allocation10 + $0x20] sm:$0xff]
    %v327 = vld [vmem:[#allocation10 + $0x28] sm:$0xff]
    %v328 = vld [vmem:[#allocation10 + $0x30] sm:$0xff]
    %v329 = vld [vmem:[#allocation10 + $0x38] sm:$0xff]
    %v330 = vld [vmem:[#allocation10 + $0x40] sm:$0xff]
    %v331 = vld [vmem:[#allocation10 + $0x48] sm:$0xff]
    %v332 = vld [vmem:[#allocation10 + $0x50] sm:$0xff]
    %v333 = vld [vmem:[#allocation10 + $0x58] sm:$0xff]
    %v334 = vld [vmem:[#allocation10 + $0x60] sm:$0xff]
    %v335 = vld [vmem:[#allocation10 + $0x68] sm:$0xff]
    %v336 = vld [vmem:[#allocation10 + $0x70] sm:$0xff]
    %v337 = vld [vmem:[#allocation10 + $0x78] sm:$0xff]
    %v338 = vld [vmem:[#allocation10 + $0x80] sm:$0xff]
    %v339 = vld [vmem:[#allocation10 + $0x88] sm:$0xff]
    %v340 = vld [vmem:[#allocation10 + $0x90] sm:$0xff]
    %v341 = vld [vmem:[#allocation10 + $0x98] sm:$0xff]
    %v342 = vld [vmem:[#allocation10 + $0xa0] sm:$0xff]
    %v343 = vld [vmem:[#allocation10 + $0xa8] sm:$0xff]
    %v344 = vld [vmem:[#allocation10 + $0xb0] sm:$0xff]
    %v345 = vld [vmem:[#allocation10 + $0xb8] sm:$0xff]
    %v346 = vld [vmem:[#allocation10 + $0xc0] sm:$0xff]
    %v347 = vld [vmem:[#allocation10 + $0xc8] sm:$0xff]
    %v348 = vld [vmem:[#allocation10 + $0xd0] sm:$0xff]
    %v349 = vld [vmem:[#allocation10 + $0xd8] sm:$0xff]
    %v350 = vld [vmem:[#allocation10 + $0xe0] sm:$0xff]
    %v351 = vld [vmem:[#allocation10 + $0xe8] sm:$0xff]
    %v352 = vld [vmem:[#allocation10 + $0xf0] sm:$0xff]
    %v353 = vld [vmem:[#allocation10 + $0xf8] sm:$0xff]
    %v354 = vld [vmem:[#allocation10 + $0x100] sm:$0xff]
    %v355 = vld [vmem:[#allocation10 + $0x108] sm:$0xff]
    %v356 = vld [vmem:[#allocation10 + $0x110] sm:$0xff]
    %v357 = vld [vmem:[#allocation10 + $0x118] sm:$0xff]
    %v358 = vld [vmem:[#allocation10 + $0x120] sm:$0xff]
    %v359 = vld [vmem:[#allocation10 + $0x128] sm:$0xff]
    %v360 = vld [vmem:[#allocation10 + $0x130] sm:$0xff]
    %v361 = vld [vmem:[#allocation10 + $0x138] sm:$0xff]
    %v362 = vld [vmem:[#allocation10 + $0x140] sm:$0xff]
    %v363 = vld [vmem:[#allocation10 + $0x148] sm:$0xff]
    %v364 = vld [vmem:[#allocation10 + $0x150] sm:$0xff]
    %v365 = vld [vmem:[#allocation10 + $0x158] sm:$0xff]
    %v366 = vld [vmem:[#allocation10 + $0x160] sm:$0xff]
    %v367 = vld [vmem:[#allocation10 + $0x168] sm:$0xff]
    %v368 = vld [vmem:[#allocation10 + $0x170] sm:$0xff]
    %v369 = vld [vmem:[#allocation10 + $0x178] sm:$0xff]
    %v370 = vld [vmem:[#allocation10 + $0x180] sm:$0xff]
    %v371 = vld [vmem:[#allocation10 + $0x188] sm:$0xff]
    %v372 = vld [vmem:[#allocation10 + $0x190] sm:$0xff]
    %v373 = vld [vmem:[#allocation10 + $0x198] sm:$0xff]
    %v374 = vld [vmem:[#allocation10 + $0x1a0] sm:$0xff]
    %v375 = vld [vmem:[#allocation10 + $0x1a8] sm:$0xff]
    %v376 = vld [vmem:[#allocation10 + $0x1b0] sm:$0xff]
    %v377 = vld [vmem:[#allocation10 + $0x1b8] sm:$0xff]
    %v378 = vld [vmem:[#allocation10 + $0x1c0] sm:$0xff]
    %v379 = vld [vmem:[#allocation10 + $0x1c8] sm:$0xff]
    %v380 = vld [vmem:[#allocation10 + $0x1d0] sm:$0xff]
    %v381 = vld [vmem:[#allocation10 + $0x1d8] sm:$0xff]
    %v382 = vld [vmem:[#allocation10 + $0x1e0] sm:$0xff]
    %v383 = vld [vmem:[#allocation10 + $0x1e8] sm:$0xff]
    %v384 = vld [vmem:[#allocation10 + $0x1f0] sm:$0xff]
    %v385 = vld [vmem:[#allocation10 + $0x1f8] sm:$0xff]
    %386 = vmatpush.msra.mxu0 %v382
    %387 = vmatpush.msra.mxu0 %v378
    %388 = vmatpush.msra.mxu0 %v374
    %389 = vmatpush.msra.mxu0 %v370
    %390 = vmatpush.msra.mxu0 %v366
    %391 = vmatpush.msra.mxu0 %v362
    %392 = vmatpush.msra.mxu0 %v358
    %393 = vmatpush.msra.mxu0 %v354
    %394 = vmatpush.msra.mxu0 %v350
    %395 = vmatpush.msra.mxu0 %v346
    %396 = vmatpush.msra.mxu0 %v342
    %397 = vmatpush.msra.mxu0 %v338
    %398 = vmatpush.msra.mxu0 %v334
    %399 = vmatpush.msra.mxu0 %v330
    %400 = vmatpush.msra.mxu0 %v326
    %401 = vmatpush.msra.mxu0 %v322
    %402 = vmatmul.f32.gmra.mxu0 %v117
    %v403 = vpop.f32.mrf.mxu0
    %v404 = vadd.f32 0.0, %v403
    %405 = vdwg.mxu0
    %406 = vmatpush.msra.mxu0 %v383
    %407 = vmatpush.msra.mxu0 %v379
    %408 = vmatpush.msra.mxu0 %v375
    %409 = vmatpush.msra.mxu0 %v371
    %410 = vmatpush.msra.mxu0 %v367
    %411 = vmatpush.msra.mxu0 %v363
    %412 = vmatpush.msra.mxu0 %v359
    %413 = vmatpush.msra.mxu0 %v355
    %414 = vmatpush.msra.mxu0 %v351
    %415 = vmatpush.msra.mxu0 %v347
    %416 = vmatpush.msra.mxu0 %v343
    %417 = vmatpush.msra.mxu0 %v339
    %418 = vmatpush.msra.mxu0 %v335
    %419 = vmatpush.msra.mxu0 %v331
    %420 = vmatpush.msra.mxu0 %v327
    %421 = vmatpush.msra.mxu0 %v323
    %422 = vmatmul.f32.gmra.mxu0 %v117
    %v423 = vpop.f32.mrf.mxu0
    %v424 = vadd.f32 0.0, %v423
    %425 = vdwg.mxu0
    %426 = vmatpush.msra.mxu0 %v384
    %427 = vmatpush.msra.mxu0 %v380
    %428 = vmatpush.msra.mxu0 %v376
    %429 = vmatpush.msra.mxu0 %v372
    %430 = vmatpush.msra.mxu0 %v368
    %431 = vmatpush.msra.mxu0 %v364
    %432 = vmatpush.msra.mxu0 %v360
    %433 = vmatpush.msra.mxu0 %v356
    %434 = vmatpush.msra.mxu0 %v352
    %435 = vmatpush.msra.mxu0 %v348
    %436 = vmatpush.msra.mxu0 %v344
    %437 = vmatpush.msra.mxu0 %v340
    %438 = vmatpush.msra.mxu0 %v336
    %439 = vmatpush.msra.mxu0 %v332
    %440 = vmatpush.msra.mxu0 %v328
    %441 = vmatpush.msra.mxu0 %v324
    %442 = vmatmul.f32.gmra.mxu0 %v117
    %v443 = vpop.f32.mrf.mxu0
    %v444 = vadd.f32 0.0, %v443
    %445 = vdwg.mxu0
    %446 = vmatpush.msra.mxu0 %v385
    %447 = vmatpush.msra.mxu0 %v381
    %448 = vmatpush.msra.mxu0 %v377
    %449 = vmatpush.msra.mxu0 %v373
    %450 = vmatpush.msra.mxu0 %v369
    %451 = vmatpush.msra.mxu0 %v365
    %452 = vmatpush.msra.mxu0 %v361
    %453 = vmatpush.msra.mxu0 %v357
    %454 = vmatpush.msra.mxu0 %v353
    %455 = vmatpush.msra.mxu0 %v349
    %456 = vmatpush.msra.mxu0 %v345
    %457 = vmatpush.msra.mxu0 %v341
    %458 = vmatpush.msra.mxu0 %v337
    %459 = vmatpush.msra.mxu0 %v333
    %460 = vmatpush.msra.mxu0 %v329
    %461 = vmatpush.msra.mxu0 %v325
    %462 = vmatmul.f32.gmra.mxu0 %v117
    %v463 = vpop.f32.mrf.mxu0
    %v464 = vadd.f32 0.0, %v463
    %465 = vdwg.mxu0
    %v466 = vadd.f32 %v318, %v404
    %v467 = vadd.f32 %v319, %v424
    %v468 = vadd.f32 %v320, %v444
    %v469 = vadd.f32 %v321, %v464
    %v470 = vxor.u32 %v466, 2147483648
    %v471 = vxor.u32 %v467, 2147483648
    %v472 = vxor.u32 %v468, 2147483648
    %v473 = vmul.f32 %v470, 1.442695
    %v474 = vpow.pop %v473
    %v475 = vmul.f32 %v471, 1.442695
    %v476 = vpow.pop %v475
    %v477 = vmul.f32 %v472, 1.442695
    %v478 = vpow.pop %v477
    %v479 = vadd.f32 %v474, 1.0
    %v480 = vadd.f32 %v476, 1.0
    %v481 = vadd.f32 %v478, 1.0
    %v482 = vrcp.pop %v479
    %v483 = vmul.f32 %v479, %v482
    %v484 = vsub.f32 1.0, %v483
    %v485 = vmul.f32 %v482, %v484
    %v486 = vadd.f32 %v482, %v485
    %vm487 = vweird.f32 %v479
    %vm488 = vweird.f32 %v482
    %vm489 = vmor %vm487, %vm488
    %v490 = vsel %vm489, %v482, %v486
    %v491 = vand.u32 2147483647, %v479
    %vm492 = vcmp.eq.f32.partialorder %v491, 8.507059e+37
    %v493 = vand.u32 %v479, 2147483648
    %v494 = vor.u32 1.1754944e-38, %v493
    %v495 = vsel %vm492, %v494, %v490
    %v496 = vmul.f32 1.0, %v495
    %v497 = vrcp.pop %v480
    %v498 = vmul.f32 %v480, %v497
    %v499 = vsub.f32 1.0, %v498
    %v500 = vmul.f32 %v497, %v499
    %v501 = vadd.f32 %v497, %v500
    %vm502 = vweird.f32 %v480
    %vm503 = vweird.f32 %v497
    %vm504 = vmor %vm502, %vm503
    %v505 = vsel %vm504, %v497, %v501
    %v506 = vand.u32 2147483647, %v480
    %vm507 = vcmp.eq.f32.partialorder %v506, 8.507059e+37
    %v508 = vand.u32 %v480, 2147483648
    %v509 = vor.u32 1.1754944e-38, %v508
    %v510 = vsel %vm507, %v509, %v505
    %v511 = vmul.f32 1.0, %v510
    %v512 = vrcp.pop %v481
    %v513 = vmul.f32 %v481, %v512
    %v514 = vsub.f32 1.0, %v513
    %v515 = vmul.f32 %v512, %v514
    %v516 = vadd.f32 %v512, %v515
    %vm517 = vweird.f32 %v481
    %vm518 = vweird.f32 %v512
    %vm519 = vmor %vm517, %vm518
    %v520 = vsel %vm519, %v512, %v516
    %v521 = vand.u32 2147483647, %v481
    %vm522 = vcmp.eq.f32.partialorder %v521, 8.507059e+37
    %v523 = vand.u32 %v481, 2147483648
    %v524 = vor.u32 1.1754944e-38, %v523
    %v525 = vsel %vm522, %v524, %v520
    %v526 = vmul.f32 1.0, %v525
    %v527 = vtanh.pop %v469
    %v528 = vmul.f32 %v511, %v118
    %v529 = vmul.f32 %v496, %v527
    %v530 = vadd.f32 %v528, %v529
    %531 = vadd.xlane.f32.xlu0 %v530
    %v532 = vpop.xlane.xlu0 %531
    %v533 = vmul.f32 %v530, %v530
    %534 = vadd.xlane.f32.xlu0 %v533
    %v535 = vpop.xlane.xlu0 %534
    %v536 = vmul.f32 %v532, 0.0078125
    %v537 = vmul.f32 %v535, 0.0078125
    %v538 = vmul.f32 %v536, %v536
    %v539 = vsub.f32 %v537, %v538
    %v540 = vmax.f32 %v539, 0.0
    %v541 = vsub.f32 %v530, %v536
    %v542 = vadd.f32 %v540, 1e-05
    %v543 = vrsqrt.pop %v542
    %v544 = vmul.f32 %v543, %v542
    %v545 = vmul.f32 %v544, %v543
    %v546 = vmul.f32 0.5, %v545
    %v547 = vsub.f32 1.5, %v546
    %v548 = vmul.f32 %v543, %v547
    %vm549 = vweird.f32 %v542
    %vm550 = vweird.f32 %v543
    %vm551 = vmor %vm549, %vm550
    %v552 = vsel %vm551, %v543, %v548
    %v553 = vmul.f32 %v541, %v552
    %v554 = vperm.slane %v121, 0
    %v555 = vmul.f32 %v553, %v554
    %v556 = vperm.slane %v121, 1
    %v557 = vadd.f32 %v555, %v556
    %v558 = vtanh.pop %v557
    %v559 = vmul.f32 %v526, %v558
    %560 = vadd.xlane.f32.xlu0 %v559
    %v561 = vpop.xlane.xlu0 %560
    %v562 = vmul.f32 %v559, %v559
    %563 = vadd.xlane.f32.xlu0 %v562
    %v564 = vpop.xlane.xlu0 %563
    %v565 = vmul.f32 %v561, 0.0078125
    %v566 = vmul.f32 %v564, 0.0078125
    %v567 = vmul.f32 %v565, %v565
    %v568 = vsub.f32 %v566, %v567
    %v569 = vmax.f32 %v568, 0.0
    %v570 = vsub.f32 %v559, %v565
    %v571 = vadd.f32 %v569, 1e-05
    %v572 = vrsqrt.pop %v571
    %v573 = vmul.f32 %v572, %v571
    %v574 = vmul.f32 %v573, %v572
    %v575 = vmul.f32 0.5, %v574
    %v576 = vsub.f32 1.5, %v575
    %v577 = vmul.f32 %v572, %v576
    %vm578 = vweird.f32 %v571
    %vm579 = vweird.f32 %v572
    %vm580 = vmor %vm578, %vm579
    %v581 = vsel %vm580, %v572, %v577
    %v582 = vmul.f32 %v570, %v581
    %v583 = vperm.slane %v121, 2
    %v584 = vmul.f32 %v582, %v583
    %v585 = vperm.slane %v121, 3
    %v586 = vadd.f32 %v584, %v585
    %587 = vst [vmem:[#allocation13] sm:$0xff] %v586
    %588 = vst [vmem:[#allocation14] sm:$0xff] %v557
    // Predicated region
    $region54: #{tpu_custom_call.1} parent=1 // pred_check
      _
    $region55: #{tpu_custom_call.1} parent=1 // pred_check_branch
      %590 = sbr.rel (0) target = $region57
    $region56: #{tpu_custom_call.1} parent=1 // pred_region
      %592 = vsyncadd [#allocation4], 0
      %s594 = sshll.u32 [#allocation13], 4
      %s595 = int_to_ptr.vmem [resolvable:$true] %s594
      %s596 = sshll.u32 %s7, 4
      %s597 = int_to_ptr.hbm [resolvable:$true] %s596
      %599 = dma.vmem_to_hbm [thread:$0]  %s595, 128, %s597, [#allocation4]
    $region57: #{tpu_custom_call.1} parent=1 // pred_fallthru
      _
    // Predicated region
    $region58: #{tpu_custom_call.1} parent=1 // pred_check
      _
    $region59: #{tpu_custom_call.1} parent=1 // pred_check_branch
      %601 = sbr.rel (0) target = $region61
    $region60: #{tpu_custom_call.1} parent=1 // pred_region
      %603 = vsyncadd [#allocation15], 0
      %s605 = sshll.u32 [#allocation14], 4
      %s606 = int_to_ptr.vmem [resolvable:$true] %s605
      %s607 = sshll.u32 %s8, 4
      %s608 = int_to_ptr.hbm [resolvable:$true] %s607
      %610 = dma.vmem_to_hbm [thread:$0]  %s606, 128, %s608, [#allocation15]
    $region61: #{tpu_custom_call.1} parent=1 // pred_fallthru
      _
    // Predicated region
    $region62: #{tpu_custom_call.1} parent=1 // pred_check
      _
    $region63: #{tpu_custom_call.1} parent=1 // pred_check_branch
      %612 = sbr.rel (0) target = $region65
    $region64: #{tpu_custom_call.1} parent=1 // pred_region
      %614 = dma.done [#allocation4], 128
    $region65: #{tpu_custom_call.1} parent=1 // pred_fallthru
      _
    // Predicated region
    $region66: #{tpu_custom_call.1} parent=1 // pred_check
      _
    $region67: #{tpu_custom_call.1} parent=1 // pred_check_branch
      %616 = sbr.rel (0) target = $region69
    $region68: #{tpu_custom_call.1} parent=1 // pred_region
      %618 = dma.done [#allocation15], 128
    $region69: #{tpu_custom_call.1} parent=1 // pred_fallthru
      _
    %619 = vsyncpa [#allocation3], 1
    %620 = vsyncpa [#allocation6], 1
    %621 = vsyncpa [#allocation9], 1
    %622 = vsyncpa [#allocation12], 1
    %623 = vsyncpa [#allocation4], 1
    %624 = vsyncpa [#allocation15], 1

</llo_original>
